<compile_context>
chip_gen: v7x
topology: tpu7x:2x2x1
jax: 0.10.0
libtpu: 0.0.40
codegen_flags: <defaults>
</compile_context>

<pallas_src>
import jax
import jax.numpy as jnp
from jax.experimental import pallas as pl
from jax.experimental.pallas import tpu as pltpu


def _compact_net_kernel(x_ref, w1t_ref, b1_ref, w2t_ref, b2_ref, o_ref):
    # First linear, computed transposed so the wide batch tile sits on the 128-lane
    # axis and the tiny feature dims (H=8, D_out=16) sit on sublanes:
    #   h^T[H, tile_b] = W1^T[H, D_in] . x[tile_b, D_in]^T   (contract D_in)
    hT = jnp.einsum("hd,bd->hb", w1t_ref[...], x_ref[...],
                    preferred_element_type=jnp.float32)
    # Bias ([H, 1]) broadcasts across the lane (batch) axis; tanh on the EUP in f32.
    hT = jnp.tanh(hT + b1_ref[...])
    # Dropout(p=0.0) is the identity.
    # TODO(synk): for a nonzero training-mode dropout prob, add pltpu.prng_seed +
    #             pltpu.stateful_bernoulli masking here.
    # Second linear, still transposed / lane-dense:
    #   y^T[D_out, tile_b] = W2^T[D_out, H] @ h^T[H, tile_b]
    # (h is cast to the weight dtype — an intentional extra rounding on the bf16
    #  path; accumulation stays f32 via preferred_element_type.)
    yT = jnp.dot(w2t_ref[...], hT.astype(w2t_ref.dtype),
                 preferred_element_type=jnp.float32)
    yT = yT + b2_ref[...]                       # b2 is [D_out, 1]
    # One XLU transpose per tile back to the natural [tile_b, D_out] layout so the
    # output HBM writeback is contiguous and needs no wrapper-side transpose.
    o_ref[...] = yT.T.astype(o_ref.dtype)


def compact_net_forward(x, w1, b1, w2, b2, *, tile_b=None, max_tile_b=8192,
                        out_dtype=None):
    """CompactNet forward: tanh(x @ w1 + b1) @ w2 + b2.

    x: [B, D_in]; w1: [D_in, H]; b1: [H]; w2: [H, D_out]; b2: [D_out].
    Returns [B, D_out] in `out_dtype` (default: x.dtype).  Pass bf16 `x` and/or
    `out_dtype=jnp.bfloat16` for half the HBM traffic; accumulation stays f32.
    """
    B, D_in = x.shape
    H = w1.shape[1]
    D_out = w2.shape[1]
    out_dtype = x.dtype if out_dtype is None else jnp.dtype(out_dtype)
    cdt = x.dtype                      # MXU operand dtype follows the activations

    # Tiny weights/biases: pre-transpose & cast in the wrapper (negligible bytes).
    w1t = w1.T.astype(cdt)                         # [H, D_in]
    w2t = w2.T.astype(cdt)                         # [D_out, H]
    b1c = b1.reshape(H, 1).astype(jnp.float32)
    b2c = b2.reshape(D_out, 1).astype(jnp.float32)

    # ---- batch tiling ------------------------------------------------------
    # Big tiles amortize the ~0.35 us per-grid-step overhead; for large B keep
    # >= 2 grid steps so both v7x TensorCores get work on the "parallel" axis.
    # When the whole batch fits in one tile, use a single full-array block
    # (always a legal block shape for any B; no padding or copies needed).
    if tile_b is None:
        tile_b = min(max_tile_b, 128 * pl.cdiv(B, 2 * 128))
    tile_b = max(128, 128 * pl.cdiv(tile_b, 128))
    if tile_b >= B:
        tile_b = B                                 # one block == full batch
    grid = (pl.cdiv(B, tile_b),)                   # ragged B -> partial last block

    # ---- VMEM budget: lane-padded, double-buffered tile footprint -----------
    lane_pad = lambda d: 128 * pl.cdiv(d, 128)
    sub_pad = lambda r: 8 * pl.cdiv(r, 8)
    need = 2 * sub_pad(tile_b) * lane_pad(D_in) * jnp.dtype(cdt).itemsize        # x tiles
    need += 2 * sub_pad(tile_b) * lane_pad(D_out) * jnp.dtype(out_dtype).itemsize  # out tiles
    need += 2 * (sub_pad(H) * lane_pad(D_in) + sub_pad(D_out) * lane_pad(H)) \
            * jnp.dtype(cdt).itemsize                                            # weights
    need += 2 * (sub_pad(H) + sub_pad(D_out)) * 128 * 4                          # biases
    need += 4 << 20                                # compiler scratch / intermediates
    try:
        phys_vmem = getattr(pltpu.get_tpu_info(), "vmem_capacity_bytes", 64 << 20)
    except Exception:
        phys_vmem = 64 << 20                       # conservative (v7x-sized) default
    vmem_limit = int(min(max(need, 16 << 20), phys_vmem // 2))

    # Advisory cost: lets XLA overlap this cheap memory-bound call with neighbors.
    cost = pl.CostEstimate(
        flops=2 * B * (D_in * H + H * D_out),
        transcendentals=B * H,
        bytes_accessed=int(x.size * jnp.dtype(x.dtype).itemsize
                           + B * D_out * jnp.dtype(out_dtype).itemsize
                           + (w1t.size + w2t.size) * jnp.dtype(cdt).itemsize
                           + (H + D_out) * 4))

    return pl.pallas_call(
        _compact_net_kernel,
        out_shape=jax.ShapeDtypeStruct((B, D_out), out_dtype),
        grid_spec=pltpu.PrefetchScalarGridSpec(
            num_scalar_prefetch=0,
            grid=grid,
            in_specs=[
                # Natural-layout activation tile: fully contiguous HBM reads.
                pl.BlockSpec((tile_b, D_in), lambda i: (i, 0)),
                # Weights / biases: resident, full-array blocks.  NOTE: these block
                # shapes are only legal because they equal the full array dims; if
                # feature tiling is ever added they must be (8,128)-aligned.
                pl.BlockSpec((H, D_in), lambda i: (0, 0)),
                pl.BlockSpec((H, 1), lambda i: (0, 0)),
                pl.BlockSpec((D_out, H), lambda i: (0, 0)),
                pl.BlockSpec((D_out, 1), lambda i: (0, 0)),
            ],
            # Natural-layout output tile: contiguous HBM writes, nothing to undo
            # in the wrapper (no transpose, no slice).
            out_specs=pl.BlockSpec((tile_b, D_out), lambda i: (i, 0)),
        ),
        compiler_params=pltpu.CompilerParams(
            dimension_semantics=("parallel",),     # batch tiles shard across v7x TCs
            vmem_limit_bytes=vmem_limit),
        cost_estimate=cost,
    )(x, w1t, b1c, w2t, b2c)


def xavier_normal(key, shape, gain):
    # PyTorch xavier_normal_ on a [fan_out, fan_in] weight:
    # std = gain * sqrt(2 / (fan_in + fan_out)).  `shape` here is the transposed
    # [fan_in, fan_out] layout; the std formula is symmetric.
    fan_in, fan_out = shape
    std = gain * (2.0 / (fan_in + fan_out)) ** 0.5
    return std * jax.random.normal(key, shape, dtype=jnp.float32)


if __name__ == "__main__":
    # CompactNet(compact_net_input_size=32, compact_net_hidden_size=None -> 8,
    #            compact_net_output_size=16, compact_net_dropout=0.0)
    D_in, H, D_out = 32, 32 // 4, 16

    key = jax.random.PRNGKey(0)
    kx, kw1, kb1, kw2, kb2 = jax.random.split(key, 5)

    # Weights stored pre-transposed: [in, out]. Xavier-normal with the module's gains.
    w1 = xavier_normal(kw1, (D_in, H), gain=0.01)
    w2 = xavier_normal(kw2, (H, D_out), gain=0.1)
    # nn.Linear default bias init: U(-1/sqrt(fan_in), 1/sqrt(fan_in))
    b1 = jax.random.uniform(kb1, (H,), minval=-1.0 / D_in ** 0.5,
                            maxval=1.0 / D_in ** 0.5, dtype=jnp.float32)
    b2 = jax.random.uniform(kb2, (H,) if False else (D_out,),
                            minval=-1.0 / H ** 0.5, maxval=1.0 / H ** 0.5,
                            dtype=jnp.float32)

    # --- 1) small batch, full-f32 path (single full-array block; exact) ---
    B = 8
    x = jax.random.normal(kx, (B, D_in), dtype=jnp.float32)
    out = compact_net_forward(x, w1, b1, w2, b2)
    jax.block_until_ready(out)
    ref = jnp.tanh(x @ w1 + b1) @ w2 + b2
    assert out.shape == (B, D_out)
    assert jnp.allclose(out, ref, atol=1e-5, rtol=1e-5), "f32 mismatch vs reference"

    # --- 2) ragged batch (not a tile multiple): partial last block, no pad copy ---
    B2 = 200
    x2 = jax.random.normal(kx, (B2, D_in), dtype=jnp.float32)
    out2 = compact_net_forward(x2, w1, b1, w2, b2)
    jax.block_until_ready(out2)
    ref2 = jnp.tanh(x2 @ w1 + b1) @ w2 + b2
    assert out2.shape == (B2, D_out)
    assert jnp.allclose(out2, ref2, atol=1e-5, rtol=1e-5), "ragged f32 mismatch"

    # --- 3) low-HBM-traffic path: bf16 activations in, bf16 out (f32 accumulation) ---
    B3 = 300
    x3 = jax.random.normal(kx, (B3, D_in), dtype=jnp.float32)
    out3 = compact_net_forward(x3.astype(jnp.bfloat16), w1, b1, w2, b2,
                               out_dtype=jnp.bfloat16)
    jax.block_until_ready(out3)
    ref3 = jnp.tanh(x3 @ w1 + b1) @ w2 + b2
    assert out3.shape == (B3, D_out)
    assert jnp.allclose(out3.astype(jnp.float32), ref3, atol=2e-2, rtol=2e-2), \
        "bf16 mismatch vs reference"

    print("KERNEL_OK")
</pallas_src>

<mosaic_0001>
module attributes {stable_mosaic.version = 11 : i64} {
  func.func @_compact_net_kernel(%arg0: i32, %arg1: memref<8x32xf32, #tpu.memory_space<vmem>>, %arg2: memref<8x32xf32, #tpu.memory_space<vmem>>, %arg3: memref<8x1xf32, #tpu.memory_space<vmem>>, %arg4: memref<16x8xf32, #tpu.memory_space<vmem>>, %arg5: memref<16x1xf32, #tpu.memory_space<vmem>>, %arg6: memref<8x16xf32, #tpu.memory_space<vmem>>) attributes {dimension_semantics = [#tpu.dimension_semantics<parallel>], iteration_bounds = array<i64: 1>, scalar_prefetch = 0 : i64, scratch_operands = 0 : i64, tpu.core_type = #tpu.core_type<tc>, window_params = [{transform_indices = @transform_0, window_bounds = array<i64: 8, 32>}, {pipeline_mode = #tpu.pipeline_mode<synchronous>, transform_indices = @transform_1, window_bounds = array<i64: 8, 32>}, {pipeline_mode = #tpu.pipeline_mode<synchronous>, transform_indices = @transform_2, window_bounds = array<i64: 8, 1>}, {pipeline_mode = #tpu.pipeline_mode<synchronous>, transform_indices = @transform_3, window_bounds = array<i64: 16, 8>}, {pipeline_mode = #tpu.pipeline_mode<synchronous>, transform_indices = @transform_4, window_bounds = array<i64: 16, 1>}, {transform_indices = @transform_5, window_bounds = array<i64: 8, 16>}]} {
    %c0 = arith.constant 0 : index
    %c0_0 = arith.constant 0 : index
    %0 = vector.load %arg2[%c0, %c0_0] : memref<8x32xf32, #tpu.memory_space<vmem>>, vector<8x32xf32>
    %c0_1 = arith.constant 0 : index
    %c0_2 = arith.constant 0 : index
    %1 = vector.load %arg1[%c0_1, %c0_2] : memref<8x32xf32, #tpu.memory_space<vmem>>, vector<8x32xf32>
    "tpu.trace_start"() <{level = 10 : i32, message = "hd,bd->hb"}> : () -> ()
    %cst = arith.constant dense<0.000000e+00> : vector<8x8xf32>
    %2 = tpu.matmul %0, %1, %cst {dimension_numbers = #tpu.dot_dimension_numbers<[1], [1], [0], [0], [0, 0, 1, 0], [], []>} : vector<8x32xf32>, vector<8x32xf32>, vector<8x8xf32> -> vector<8x8xf32>
    "tpu.trace_stop"() : () -> ()
    %c0_3 = arith.constant 0 : index
    %c0_4 = arith.constant 0 : index
    %3 = vector.load %arg3[%c0_3, %c0_4] : memref<8x1xf32, #tpu.memory_space<vmem>>, vector<8x1xf32>
    %4 = vector.broadcast %3 : vector<8x1xf32> to vector<8x8xf32>
    %5 = arith.addf %2, %4 : vector<8x8xf32>
    %6 = math.tanh %5 : vector<8x8xf32>
    %c0_5 = arith.constant 0 : index
    %c0_6 = arith.constant 0 : index
    %7 = vector.load %arg4[%c0_5, %c0_6] : memref<16x8xf32, #tpu.memory_space<vmem>>, vector<16x8xf32>
    %cst_7 = arith.constant dense<0.000000e+00> : vector<16x8xf32>
    %8 = tpu.matmul %7, %6, %cst_7 {dimension_numbers = #tpu.dot_dimension_numbers<[1], [0], [0], [1], [0, 0, 1, 1], [], []>} : vector<16x8xf32>, vector<8x8xf32>, vector<16x8xf32> -> vector<16x8xf32>
    %c0_8 = arith.constant 0 : index
    %c0_9 = arith.constant 0 : index
    %9 = vector.load %arg5[%c0_8, %c0_9] : memref<16x1xf32, #tpu.memory_space<vmem>>, vector<16x1xf32>
    %10 = vector.broadcast %9 : vector<16x1xf32> to vector<16x8xf32>
    %11 = arith.addf %8, %10 : vector<16x8xf32>
    %12 = tpu.transpose %11, [1, 0] : vector<16x8xf32> -> vector<8x16xf32>
    %c0_10 = arith.constant 0 : index
    %c0_11 = arith.constant 0 : index
    %13 = vector.load %arg6[%c0_10, %c0_11] : memref<8x16xf32, #tpu.memory_space<vmem>>, vector<8x16xf32>
    tpu.vector_store %arg6[%c0_10, %c0_11], %12 {strides = array<i32>} : memref<8x16xf32, #tpu.memory_space<vmem>>, vector<8x16xf32>,
    return
  }
  func.func @transform_0(%arg0: i32) -> (i32, i32) {
    %c0_i32 = arith.constant 0 : i32
    %c0_i32_0 = arith.constant 0 : i32
    return %arg0, %c0_i32 : i32, i32
  }
  func.func @transform_1(%arg0: i32) -> (i32, i32) {
    %c0_i32 = arith.constant 0 : i32
    %c0_i32_0 = arith.constant 0 : i32
    %c0_i32_1 = arith.constant 0 : i32
    return %c0_i32, %c0_i32_0 : i32, i32
  }
  func.func @transform_2(%arg0: i32) -> (i32, i32) {
    %c0_i32 = arith.constant 0 : i32
    %c0_i32_0 = arith.constant 0 : i32
    %c0_i32_1 = arith.constant 0 : i32
    return %c0_i32, %c0_i32_0 : i32, i32
  }
  func.func @transform_3(%arg0: i32) -> (i32, i32) {
    %c0_i32 = arith.constant 0 : i32
    %c0_i32_0 = arith.constant 0 : i32
    %c0_i32_1 = arith.constant 0 : i32
    return %c0_i32, %c0_i32_0 : i32, i32
  }
  func.func @transform_4(%arg0: i32) -> (i32, i32) {
    %c0_i32 = arith.constant 0 : i32
    %c0_i32_0 = arith.constant 0 : i32
    %c0_i32_1 = arith.constant 0 : i32
    return %c0_i32, %c0_i32_0 : i32, i32
  }
  func.func @transform_5(%arg0: i32) -> (i32, i32) {
    %c0_i32 = arith.constant 0 : i32
    %c0_i32_0 = arith.constant 0 : i32
    return %arg0, %c0_i32 : i32, i32
  }
}

</mosaic_0001>

<llo_original>
// kernel: tpu_custom_call.1
$region0: #{tpu_custom_call.1}
  #allocation0 [shape = 'u32[]', space=smem, size = 0x4, offset = 0x4, fixed_abs, tag = 'smem constant byte address 0x4 - core index']
  #allocation1 [shape = 'u32[144,128]{1,0:T(1,128)}', space=vmem, size = 0x12000, scoped, tag = 'internal scratch']
  %s0 = inlined_call_operand.vmem [shape: f32[8,32], index: 0, kind: input, shape index: {}]
  %s1 = inlined_call_operand.vmem [shape: f32[8,32], index: 1, kind: input, shape index: {}]
  %s2 = inlined_call_operand.vmem [shape: f32[8,1], index: 2, kind: input, shape index: {}]
  %s3 = inlined_call_operand.vmem [shape: f32[16,8], index: 3, kind: input, shape index: {}]
  %s4 = inlined_call_operand.vmem [shape: f32[16,1], index: 4, kind: input, shape index: {}]
  %s5 = inlined_call_operand.hbm [shape: f32[8,16], index: 5, kind: output, shape index: {}]
  %s6 = sld [smem:[#allocation0]]
  $region30: #{tpu_custom_call.1} parent=0
    _
  %s8 = ssub.s32 1, %s6
  %s9 = scalar_select 0, %s8, %s6
  $region1: #{tpu_custom_call.1} parent=0
    #allocation2 [shape = 'u8[4096]{0}', space=vmem, size = 0x1000, scoped, tag = 'output window, operand 0, single buffered']
    #allocation3 [shape = 's32[1]{0}', space=sflag, size = 0x4, scoped, tag = 'scoped memory for tpu_custom_call.1']
    %10 = vsyncpa [#allocation3], 0
    // Predicated region
    $region2: #{tpu_custom_call.1} parent=1 // pred_check
      _
    $region3: #{tpu_custom_call.1} parent=1 // pred_check_branch
      %12 = sbr.rel (0) target = $region5
    $region4: #{tpu_custom_call.1} parent=1 // pred_region
      _
    $region5: #{tpu_custom_call.1} parent=1 // pred_fallthru
      _
    // Predicated region
    $region6: #{tpu_custom_call.1} parent=1 // pred_check
      _
    $region7: #{tpu_custom_call.1} parent=1 // pred_check_branch
      %14 = sbr.rel (0) target = $region9
    $region8: #{tpu_custom_call.1} parent=1 // pred_region
      _
    $region9: #{tpu_custom_call.1} parent=1 // pred_fallthru
      _
    // Predicated region
    $region10: #{tpu_custom_call.1} parent=1 // pred_check
      _
    $region11: #{tpu_custom_call.1} parent=1 // pred_check_branch
      %16 = sbr.rel (0) target = $region13
    $region12: #{tpu_custom_call.1} parent=1 // pred_region
      _
    $region13: #{tpu_custom_call.1} parent=1 // pred_fallthru
      _
    // Predicated region
    $region14: #{tpu_custom_call.1} parent=1 // pred_check
      _
    $region15: #{tpu_custom_call.1} parent=1 // pred_check_branch
      %18 = sbr.rel (0) target = $region17
    $region16: #{tpu_custom_call.1} parent=1 // pred_region
      _
    $region17: #{tpu_custom_call.1} parent=1 // pred_fallthru
      _
    // Predicated region
    $region18: #{tpu_custom_call.1} parent=1 // pred_check
      _
    $region19: #{tpu_custom_call.1} parent=1 // pred_check_branch
      %20 = sbr.rel (0) target = $region21
    $region20: #{tpu_custom_call.1} parent=1 // pred_region
      _
    $region21: #{tpu_custom_call.1} parent=1 // pred_fallthru
      _
    %v21 = vld [vmem:[%s1] sm:$0xff]
    %v22 = vld [vmem:[%s0] sm:$0xff]
    %v23 = vld [vmem:[%s2] sm:$0xff]
    %25 = vset.pattern.permute.xlu0 0
    %26 = vperm.xlu0 %25, %v23
    %v27 = vpop.permute.xlu0 %26
    %vm29 = vcmask 261120
    %v31 = vsel %vm29, %v21, 0
    %v34 = vsel %vm29, %v22, 0
    %36 = vmatprep.subr.mxu0 0.0
    %37 = vmatpush1.xpose.msra.mxu0 %v34
    %38 = vmatprep.subr.mxu0 0.0
    %39 = vmatpush1.xpose.msra.mxu0 0.0
    %40 = vmatprep.subr.mxu0 0.0
    %41 = vmatpush1.xpose.msra.mxu0 0.0
    %42 = vmatprep.subr.mxu0 0.0
    %43 = vmatpush1.xpose.msra.mxu0 0.0
    %44 = vmatprep.subr.mxu0 0.0
    %45 = vmatpush1.xpose.msra.mxu0 0.0
    %46 = vmatprep.subr.mxu0 0.0
    %47 = vmatpush1.xpose.msra.mxu0 0.0
    %48 = vmatprep.subr.mxu0 0.0
    %49 = vmatpush1.xpose.msra.mxu0 0.0
    %50 = vmatprep.subr.mxu0 0.0
    %51 = vmatpush1.xpose.msra.mxu0 0.0
    %52 = vmatprep.subr.mxu0 0.0
    %53 = vmatpush1.xpose.msra.mxu0 0.0
    %54 = vmatprep.subr.mxu0 0.0
    %55 = vmatpush1.xpose.msra.mxu0 0.0
    %56 = vmatprep.subr.mxu0 0.0
    %57 = vmatpush1.xpose.msra.mxu0 0.0
    %58 = vmatprep.subr.mxu0 0.0
    %59 = vmatpush1.xpose.msra.mxu0 0.0
    %60 = vmatprep.subr.mxu0 0.0
    %61 = vmatpush1.xpose.msra.mxu0 0.0
    %62 = vmatprep.subr.mxu0 0.0
    %63 = vmatpush1.xpose.msra.mxu0 0.0
    %64 = vmatprep.subr.mxu0 0.0
    %65 = vmatpush1.xpose.msra.mxu0 0.0
    %66 = vmatprep.subr.mxu0 0.0
    %67 = vmatpush1.xpose.msra.mxu0 0.0
    %68 = vmatprep.subr.mxu0 0.0
    %69 = vmatpush1.xpose.msra.mxu0 0.0
    %70 = vmatprep.subr.mxu0 0.0
    %71 = vmatpush1.xpose.msra.mxu0 0.0
    %72 = vmatprep.subr.mxu0 0.0
    %73 = vmatpush1.xpose.msra.mxu0 0.0
    %74 = vmatprep.subr.mxu0 0.0
    %75 = vmatpush1.xpose.msra.mxu0 0.0
    %76 = vmatprep.subr.mxu0 0.0
    %77 = vmatpush1.xpose.msra.mxu0 0.0
    %78 = vmatprep.subr.mxu0 0.0
    %79 = vmatpush1.xpose.msra.mxu0 0.0
    %80 = vmatprep.subr.mxu0 0.0
    %81 = vmatpush1.xpose.msra.mxu0 0.0
    %82 = vmatprep.subr.mxu0 0.0
    %83 = vmatpush1.xpose.msra.mxu0 0.0
    %84 = vmatprep.subr.mxu0 0.0
    %85 = vmatpush1.xpose.msra.mxu0 0.0
    %86 = vmatprep.subr.mxu0 0.0
    %87 = vmatpush1.xpose.msra.mxu0 0.0
    %88 = vmatprep.subr.mxu0 0.0
    %89 = vmatpush1.xpose.msra.mxu0 0.0
    %90 = vmatprep.subr.mxu0 0.0
    %91 = vmatpush1.xpose.msra.mxu0 0.0
    %92 = vmatprep.subr.mxu0 0.0
    %93 = vmatpush1.xpose.msra.mxu0 0.0
    %94 = vmatprep.subr.mxu0 0.0
    %95 = vmatpush1.xpose.msra.mxu0 0.0
    %96 = vmatprep.subr.mxu0 0.0
    %97 = vmatpush1.xpose.msra.mxu0 0.0
    %98 = vmatprep.subr.mxu0 0.0
    %99 = vmatpush1.xpose.msra.mxu0 0.0
    %100 = vmatprep.mubr.f32.mxu0 0.0
    %101 = vmatmul.mubr.f32.gmra.mrb[0].mxu0 %v31
    %v102 = vpop.f32.mrb[0].mxu0
    %v103 = vadd.f32 %v27, %v102
    %v104 = vpop.f32.mrb[0].mxu0
    %105 = vdwg.mxu0
    %v106 = vtanh.pop %v103
    %v107 = vld [vmem:[%s3] sm:$0xff]
    %v108 = vld [vmem:[%s3 + $0x8] sm:$0xff]
    %v109 = vld [vmem:[%s4] sm:$0xff]
    %v110 = vld [vmem:[%s4 + $0x8] sm:$0xff]
    %112 = vset.pattern.permute.xlu0 0
    %113 = vperm.xlu0 %112, %v109
    %v114 = vpop.permute.xlu0 %113
    %117 = vset.pattern.permute.xlu0 0
    %118 = vperm.xlu0 %117, %v110
    %v119 = vpop.permute.xlu0 %118
    %vm121 = vcmask 64512
    %v123 = vsel %vm121, %v107, 0
    %v126 = vsel %vm121, %v108, 0
    %128 = vmatprep.subr.mxu0 0.0
    %129 = vmatpush1.msra.mxu0 %v106
    %130 = vmatprep.subr.mxu0 0.0
    %131 = vmatpush1.msra.mxu0 0.0
    %132 = vmatprep.subr.mxu0 0.0
    %133 = vmatpush1.msra.mxu0 0.0
    %134 = vmatprep.subr.mxu0 0.0
    %135 = vmatpush1.msra.mxu0 0.0
    %136 = vmatprep.subr.mxu0 0.0
    %137 = vmatpush1.msra.mxu0 0.0
    %138 = vmatprep.subr.mxu0 0.0
    %139 = vmatpush1.msra.mxu0 0.0
    %140 = vmatprep.subr.mxu0 0.0
    %141 = vmatpush1.msra.mxu0 0.0
    %142 = vmatprep.subr.mxu0 0.0
    %143 = vmatpush1.msra.mxu0 0.0
    %144 = vmatprep.subr.mxu0 0.0
    %145 = vmatpush1.msra.mxu0 0.0
    %146 = vmatprep.subr.mxu0 0.0
    %147 = vmatpush1.msra.mxu0 0.0
    %148 = vmatprep.subr.mxu0 0.0
    %149 = vmatpush1.msra.mxu0 0.0
    %150 = vmatprep.subr.mxu0 0.0
    %151 = vmatpush1.msra.mxu0 0.0
    %152 = vmatprep.subr.mxu0 0.0
    %153 = vmatpush1.msra.mxu0 0.0
    %154 = vmatprep.subr.mxu0 0.0
    %155 = vmatpush1.msra.mxu0 0.0
    %156 = vmatprep.subr.mxu0 0.0
    %157 = vmatpush1.msra.mxu0 0.0
    %158 = vmatprep.subr.mxu0 0.0
    %159 = vmatpush1.msra.mxu0 0.0
    %160 = vmatprep.subr.mxu0 0.0
    %161 = vmatpush1.msra.mxu0 0.0
    %162 = vmatprep.subr.mxu0 0.0
    %163 = vmatpush1.msra.mxu0 0.0
    %164 = vmatprep.subr.mxu0 0.0
    %165 = vmatpush1.msra.mxu0 0.0
    %166 = vmatprep.subr.mxu0 0.0
    %167 = vmatpush1.msra.mxu0 0.0
    %168 = vmatprep.subr.mxu0 0.0
    %169 = vmatpush1.msra.mxu0 0.0
    %170 = vmatprep.subr.mxu0 0.0
    %171 = vmatpush1.msra.mxu0 0.0
    %172 = vmatprep.subr.mxu0 0.0
    %173 = vmatpush1.msra.mxu0 0.0
    %174 = vmatprep.subr.mxu0 0.0
    %175 = vmatpush1.msra.mxu0 0.0
    %176 = vmatprep.subr.mxu0 0.0
    %177 = vmatpush1.msra.mxu0 0.0
    %178 = vmatprep.subr.mxu0 0.0
    %179 = vmatpush1.msra.mxu0 0.0
    %180 = vmatprep.subr.mxu0 0.0
    %181 = vmatpush1.msra.mxu0 0.0
    %182 = vmatprep.subr.mxu0 0.0
    %183 = vmatpush1.msra.mxu0 0.0
    %184 = vmatprep.subr.mxu0 0.0
    %185 = vmatpush1.msra.mxu0 0.0
    %186 = vmatprep.subr.mxu0 0.0
    %187 = vmatpush1.msra.mxu0 0.0
    %188 = vmatprep.subr.mxu0 0.0
    %189 = vmatpush1.msra.mxu0 0.0
    %190 = vmatprep.subr.mxu0 0.0
    %191 = vmatpush1.msra.mxu0 0.0
    %192 = vmatprep.mubr.f32.mxu0 0.0
    %193 = vmatmul.mubr.f32.gmra.mrb[0].mxu0 %v123
    %v194 = vpop.f32.mrb[0].mxu0
    %v195 = vadd.f32 %v114, %v194
    %v196 = vpop.f32.mrb[0].mxu0
    %197 = vmatprep.mubr.f32.mxu0 0.0
    %198 = vmatmul.mubr.f32.gmra.mrb[0].mxu0 %v126
    %v199 = vpop.f32.mrb[0].mxu0
    %v200 = vadd.f32 %v119, %v199
    %v201 = vpop.f32.mrb[0].mxu0
    %202 = vdwg.mxu0
    %203 = vxpose.xlu0.b32.start [1/16] %v195, 128
    %204 = vxpose.xlu0.b32.cont [2/16] %v200, 128
    %205 = vxpose.xlu0.b32.cont [3/16] 0.0, 128
    %206 = vxpose.xlu0.b32.cont [4/16] 0.0, 128
    %207 = vxpose.xlu0.b32.cont [5/16] 0.0, 128
    %208 = vxpose.xlu0.b32.cont [6/16] 0.0, 128
    %209 = vxpose.xlu0.b32.cont [7/16] 0.0, 128
    %210 = vxpose.xlu0.b32.cont [8/16] 0.0, 128
    %211 = vxpose.xlu0.b32.cont [9/16] 0.0, 128
    %212 = vxpose.xlu0.b32.cont [10/16] 0.0, 128
    %213 = vxpose.xlu0.b32.cont [11/16] 0.0, 128
    %214 = vxpose.xlu0.b32.cont [12/16] 0.0, 128
    %215 = vxpose.xlu0.b32.cont [13/16] 0.0, 128
    %216 = vxpose.xlu0.b32.cont [14/16] 0.0, 128
    %217 = vxpose.xlu0.b32.cont [15/16] 0.0, 128
    %218 = vxpose.xlu0.b32.end [16/16] 0.0, 128
    %v219 = vpop.trf.xlu0
    %v220 = vpop.trf.xlu0
    %v221 = vpop.trf.xlu0
    %v222 = vpop.trf.xlu0
    %v223 = vpop.trf.xlu0
    %v224 = vpop.trf.xlu0
    %v225 = vpop.trf.xlu0
    %v226 = vpop.trf.xlu0
    %v227 = vpop.trf.xlu0
    %v228 = vpop.trf.xlu0
    %v229 = vpop.trf.xlu0
    %v230 = vpop.trf.xlu0
    %v231 = vpop.trf.xlu0
    %v232 = vpop.trf.xlu0
    %v233 = vpop.trf.xlu0
    %v234 = vpop.trf.xlu0
    %vm235 = vcmask 130048
    %236 = vst.msk [vmem:[#allocation2] sm:$0xff] %vm235, %v219
    // Predicated region
    $region22: #{tpu_custom_call.1} parent=1 // pred_check
      _
    $region23: #{tpu_custom_call.1} parent=1 // pred_check_branch
      %238 = sbr.rel (0) target = $region25
    $region24: #{tpu_custom_call.1} parent=1 // pred_region
      %s240 = ssub.s32 128, 128
      %241 = vsyncadd [#allocation3], %s240
      %s243 = sshll.u32 [#allocation2], 4
      %s244 = int_to_ptr.vmem [resolvable:$true] %s243
      %246 = dma.vmem_to_hbm [thread:$0]  %s244, 128, %s5, [#allocation3]
    $region25: #{tpu_custom_call.1} parent=1 // pred_fallthru
      _
    // Predicated region
    $region26: #{tpu_custom_call.1} parent=1 // pred_check
      _
    $region27: #{tpu_custom_call.1} parent=1 // pred_check_branch
      %248 = sbr.rel (0) target = $region29
    $region28: #{tpu_custom_call.1} parent=1 // pred_region
      %249 = dma.done [#allocation3], 128
    $region29: #{tpu_custom_call.1} parent=1 // pred_fallthru
      _
    %250 = vsyncpa [#allocation3], 1

</llo_original>
